<compile_context>
chip_gen: v7x
topology: tpu7x:2x2x1
jax: 0.10.0
libtpu: 0.0.40
codegen_flags: <defaults>
</compile_context>

<pallas_src>
import jax
import jax.numpy as jnp
from jax.experimental import pallas as pl
from jax.experimental.pallas import tpu as pltpu


def _actor_kernel(s_ref, wenc_ref, w12_ref, w3_ref, o_ref):
    hidden = wenc_ref.shape[1]
    half = hidden // 2

    # One encoder matmul: [s_h | s_ev] @ block_diag(Wh, Wev) -> [fh | fev].
    s = s_ref[...].astype(jnp.bfloat16)
    f = jnp.tanh(jnp.dot(s, wenc_ref[...], preferred_element_type=jnp.float32))
    fh = f[:, :half]
    fev = f[:, half:]

    # Feature fusion without concat: fused = [fev, fh*fev]  =>  split the W1
    # contraction across the two row-halves of W1 (static slices, bf16-tile
    # aligned for hidden multiples of 32).
    w1 = w12_ref[0]
    h1 = jnp.tanh(
        jnp.dot(fev.astype(jnp.bfloat16), w1[:half, :],
                preferred_element_type=jnp.float32)
        + jnp.dot((fh * fev).astype(jnp.bfloat16), w1[half:, :],
                  preferred_element_type=jnp.float32))

    h2 = jnp.tanh(jnp.dot(h1.astype(jnp.bfloat16), w12_ref[1],
                          preferred_element_type=jnp.float32))

    # Final hidden->1 projection on VPU (mul) + XLU (lane reduce) instead of a
    # 1-lane MXU pass; w3 comes in as a (1, hidden) row.
    w3 = w3_ref[...].astype(jnp.float32)
    o = jnp.tanh(jnp.sum(h2 * w3, axis=-1, keepdims=True))
    o_ref[...] = o.astype(o_ref.dtype)


def _round_up(x, m):
    return ((x + m - 1) // m) * m


def deterministic_actor_forward(s_h, s_ev, params):
    """Fused actor forward pass.

    s_h:  [B, 2] float32, s_ev: [B, 4] float32.
    params: weights stored as (in_features, out_features), i.e. already
            transposed relative to PyTorch's nn.Linear (out, in) layout.
    """
    B = s_h.shape[0]
    hidden = params["w1"].shape[0]
    half = hidden // 2
    assert hidden % 2 == 0, "hidden must be even"
    cdt = jnp.bfloat16

    # --- pack operands (plain JAX; cheap, and constant-foldable under jit) ---
    # One (B, 6) input instead of two tiny ones.
    s = jnp.concatenate([s_h, s_ev], axis=-1).astype(jnp.float32)

    # Block-diagonal encoder weight: [s_h | s_ev] @ W_enc == [fh_pre | fev_pre].
    wenc = jnp.zeros((6, hidden), cdt)
    wenc = wenc.at[:2, :half].set(params["wh"].astype(cdt))
    wenc = wenc.at[2:, half:].set(params["wev"].astype(cdt))

    # W1 / W2 stacked into one slab; W3 as a (1, hidden) row for the VPU reduce.
    w12 = jnp.stack([params["w1"].astype(cdt), params["w2"].astype(cdt)], axis=0)
    w3_row = params["w3"].astype(cdt).reshape(1, hidden)

    # --- batch tiling: TB multiple of 8, capped so intermediates stay tiny ---
    TB = min(512, _round_up(B, 8))
    B_pad = _round_up(B, TB)
    if B_pad != B:
        s = jnp.pad(s, ((0, B_pad - B), (0, 0)))
    grid = (B_pad // TB,)

    out = pl.pallas_call(
        _actor_kernel,
        out_shape=jax.ShapeDtypeStruct((B_pad, 1), jnp.float32),
        grid=grid,
        in_specs=[
            pl.BlockSpec((TB, 6), lambda i: (i, 0)),
            pl.BlockSpec((6, hidden), lambda i: (0, 0)),        # resident
            pl.BlockSpec((2, hidden, hidden), lambda i: (0, 0, 0)),  # resident
            pl.BlockSpec((1, hidden), lambda i: (0, 0)),        # resident
        ],
        out_specs=pl.BlockSpec((TB, 1), lambda i: (i, 0)),
        compiler_params=pltpu.CompilerParams(
            dimension_semantics=("parallel",)),
    )(s, wenc, w12, w3_row)
    return out[:B]


def init_params(key, hidden):
    """Matches nn.init.normal_(w, mean=0, std=0.1); stored as (in, out)."""
    half = hidden // 2
    ks = jax.random.split(key, 5)
    std = 0.1
    return {
        "wh":  std * jax.random.normal(ks[0], (2, half), jnp.float32),
        "wev": std * jax.random.normal(ks[1], (4, half), jnp.float32),
        "w1":  std * jax.random.normal(ks[2], (hidden, hidden), jnp.float32),
        "w2":  std * jax.random.normal(ks[3], (hidden, hidden), jnp.float32),
        "w3":  std * jax.random.normal(ks[4], (hidden, 1), jnp.float32),
    }


def _reference_forward(s_h, s_ev, params):
    """Pure-JAX (f32) reference of the PyTorch module."""
    fh = jnp.tanh(s_h @ params["wh"])
    fev = jnp.tanh(s_ev @ params["wev"])
    x = jnp.concatenate([fev, fh * fev], axis=-1)
    x = jnp.tanh(x @ params["w1"])
    x = jnp.tanh(x @ params["w2"])
    return jnp.tanh(x @ params["w3"])


if __name__ == "__main__":
    key = jax.random.PRNGKey(0)
    k_params, k_sh, k_sev = jax.random.split(key, 3)

    batch = 8
    hidden = 32          # must be even (hidden/2 per feature branch)

    params = init_params(k_params, hidden)
    s_h = jax.random.normal(k_sh, (batch, 2), jnp.float32)
    s_ev = jax.random.normal(k_sev, (batch, 4), jnp.float32)

    out = deterministic_actor_forward(s_h, s_ev, params)
    out = jax.block_until_ready(out)

    ref = _reference_forward(s_h, s_ev, params)
    assert out.shape == (batch, 1), out.shape
    # bf16 MXU inputs (f32 accumulation) -> loosened tolerance vs f32 reference.
    assert jnp.allclose(out, ref, atol=2e-2, rtol=2e-2), (out, ref)

    print("KERNEL_OK")
</pallas_src>

<mosaic_0001>
module attributes {stable_mosaic.version = 11 : i64} {
  func.func @_actor_kernel(%arg0: i32, %arg1: memref<8x6xf32, #tpu.memory_space<vmem>>, %arg2: memref<6x32xbf16, #tpu.memory_space<vmem>>, %arg3: memref<2x32x32xbf16, #tpu.memory_space<vmem>>, %arg4: memref<1x32xbf16, #tpu.memory_space<vmem>>, %arg5: memref<8x1xf32, #tpu.memory_space<vmem>>) attributes {dimension_semantics = [#tpu.dimension_semantics<parallel>], iteration_bounds = array<i64: 1>, scalar_prefetch = 0 : i64, scratch_operands = 0 : i64, tpu.core_type = #tpu.core_type<tc>, window_params = [{transform_indices = @transform_0, window_bounds = array<i64: 8, 6>}, {pipeline_mode = #tpu.pipeline_mode<synchronous>, transform_indices = @transform_1, window_bounds = array<i64: 6, 32>}, {pipeline_mode = #tpu.pipeline_mode<synchronous>, transform_indices = @transform_2, window_bounds = array<i64: 2, 32, 32>}, {pipeline_mode = #tpu.pipeline_mode<synchronous>, transform_indices = @transform_3, window_bounds = array<i64: 1, 32>}, {transform_indices = @transform_4, window_bounds = array<i64: 8, 1>}]} {
    %c0 = arith.constant 0 : index
    %c0_0 = arith.constant 0 : index
    %0 = vector.load %arg1[%c0, %c0_0] : memref<8x6xf32, #tpu.memory_space<vmem>>, vector<8x6xf32>
    %1 = arith.truncf %0 : vector<8x6xf32> to vector<8x6xbf16>
    %c0_1 = arith.constant 0 : index
    %c0_2 = arith.constant 0 : index
    %2 = vector.load %arg2[%c0_1, %c0_2] : memref<6x32xbf16, #tpu.memory_space<vmem>>, vector<6x32xbf16>
    %cst = arith.constant dense<0.000000e+00> : vector<8x32xf32>
    %3 = tpu.matmul %1, %2, %cst {dimension_numbers = #tpu.dot_dimension_numbers<[1], [0], [0], [1], [0, 0, 1, 1], [], []>} : vector<8x6xbf16>, vector<6x32xbf16>, vector<8x32xf32> -> vector<8x32xf32>
    %4 = math.tanh %3 : vector<8x32xf32>
    %5 = vector.extract_strided_slice %4 {offsets = [0, 0], sizes = [8, 16], strides = [1, 1]} : vector<8x32xf32> to vector<8x16xf32>
    %6 = vector.extract_strided_slice %4 {offsets = [0, 16], sizes = [8, 16], strides = [1, 1]} : vector<8x32xf32> to vector<8x16xf32>
    %c0_3 = arith.constant 0 : index
    %c0_4 = arith.constant 0 : index
    %c0_5 = arith.constant 0 : index
    %7 = vector.load %arg3[%c0_3, %c0_4, %c0_5] : memref<2x32x32xbf16, #tpu.memory_space<vmem>>, vector<1x32x32xbf16>
    %8 = vector.shape_cast %7 : vector<1x32x32xbf16> to vector<32x32xbf16>
    %9 = arith.truncf %6 : vector<8x16xf32> to vector<8x16xbf16>
    %10 = vector.extract_strided_slice %8 {offsets = [0, 0], sizes = [16, 32], strides = [1, 1]} : vector<32x32xbf16> to vector<16x32xbf16>
    %cst_6 = arith.constant dense<0.000000e+00> : vector<8x32xf32>
    %11 = tpu.matmul %9, %10, %cst_6 {dimension_numbers = #tpu.dot_dimension_numbers<[1], [0], [0], [1], [0, 0, 1, 1], [], []>} : vector<8x16xbf16>, vector<16x32xbf16>, vector<8x32xf32> -> vector<8x32xf32>
    %12 = arith.mulf %5, %6 : vector<8x16xf32>
    %13 = arith.truncf %12 : vector<8x16xf32> to vector<8x16xbf16>
    %14 = vector.extract_strided_slice %8 {offsets = [16, 0], sizes = [16, 32], strides = [1, 1]} : vector<32x32xbf16> to vector<16x32xbf16>
    %cst_7 = arith.constant dense<0.000000e+00> : vector<8x32xf32>
    %15 = tpu.matmul %13, %14, %cst_7 {dimension_numbers = #tpu.dot_dimension_numbers<[1], [0], [0], [1], [0, 0, 1, 1], [], []>} : vector<8x16xbf16>, vector<16x32xbf16>, vector<8x32xf32> -> vector<8x32xf32>
    %16 = arith.addf %11, %15 : vector<8x32xf32>
    %17 = math.tanh %16 : vector<8x32xf32>
    %18 = arith.truncf %17 : vector<8x32xf32> to vector<8x32xbf16>
    %c1 = arith.constant 1 : index
    %c0_8 = arith.constant 0 : index
    %c0_9 = arith.constant 0 : index
    %19 = vector.load %arg3[%c1, %c0_8, %c0_9] : memref<2x32x32xbf16, #tpu.memory_space<vmem>>, vector<1x32x32xbf16>
    %20 = vector.shape_cast %19 : vector<1x32x32xbf16> to vector<32x32xbf16>
    %cst_10 = arith.constant dense<0.000000e+00> : vector<8x32xf32>
    %21 = tpu.matmul %18, %20, %cst_10 {dimension_numbers = #tpu.dot_dimension_numbers<[1], [0], [0], [1], [0, 0, 1, 1], [], []>} : vector<8x32xbf16>, vector<32x32xbf16>, vector<8x32xf32> -> vector<8x32xf32>
    %22 = math.tanh %21 : vector<8x32xf32>
    %c0_11 = arith.constant 0 : index
    %c0_12 = arith.constant 0 : index
    %23 = vector.load %arg4[%c0_11, %c0_12] : memref<1x32xbf16, #tpu.memory_space<vmem>>, vector<1x32xbf16>
    %24 = arith.extf %23 : vector<1x32xbf16> to vector<1x32xf32>
    %25 = vector.broadcast %24 : vector<1x32xf32> to vector<8x32xf32>
    %26 = arith.mulf %22, %25 : vector<8x32xf32>
    %cst_13 = arith.constant dense<0.000000e+00> : vector<8xf32>
    %27 = vector.multi_reduction <add>, %26, %cst_13 [1] : vector<8x32xf32> to vector<8xf32>
    %28 = vector.shape_cast %27 : vector<8xf32> to vector<8x1xf32>
    %29 = math.tanh %28 : vector<8x1xf32>
    %c0_14 = arith.constant 0 : index
    %c0_15 = arith.constant 0 : index
    %30 = vector.load %arg5[%c0_14, %c0_15] : memref<8x1xf32, #tpu.memory_space<vmem>>, vector<8x1xf32>
    tpu.vector_store %arg5[%c0_14, %c0_15], %29 {strides = array<i32>} : memref<8x1xf32, #tpu.memory_space<vmem>>, vector<8x1xf32>,
    return
  }
  func.func @transform_0(%arg0: i32) -> (i32, i32) {
    %c0_i32 = arith.constant 0 : i32
    %c0_i32_0 = arith.constant 0 : i32
    return %arg0, %c0_i32 : i32, i32
  }
  func.func @transform_1(%arg0: i32) -> (i32, i32) {
    %c0_i32 = arith.constant 0 : i32
    %c0_i32_0 = arith.constant 0 : i32
    %c0_i32_1 = arith.constant 0 : i32
    return %c0_i32, %c0_i32_0 : i32, i32
  }
  func.func @transform_2(%arg0: i32) -> (i32, i32, i32) {
    %c0_i32 = arith.constant 0 : i32
    %c0_i32_0 = arith.constant 0 : i32
    %c0_i32_1 = arith.constant 0 : i32
    %c0_i32_2 = arith.constant 0 : i32
    return %c0_i32, %c0_i32_0, %c0_i32_1 : i32, i32, i32
  }
  func.func @transform_3(%arg0: i32) -> (i32, i32) {
    %c0_i32 = arith.constant 0 : i32
    %c0_i32_0 = arith.constant 0 : i32
    %c0_i32_1 = arith.constant 0 : i32
    return %c0_i32, %c0_i32_0 : i32, i32
  }
  func.func @transform_4(%arg0: i32) -> (i32, i32) {
    %c0_i32 = arith.constant 0 : i32
    %c0_i32_0 = arith.constant 0 : i32
    return %arg0, %c0_i32 : i32, i32
  }
}

</mosaic_0001>

<llo_original>
// kernel: tpu_custom_call.1
$region0: #{tpu_custom_call.1}
  #allocation0 [shape = 'u32[]', space=smem, size = 0x4, offset = 0x4, fixed_abs, tag = 'smem constant byte address 0x4 - core index']
  #allocation1 [shape = 'u32[144,128]{1,0:T(1,128)}', space=vmem, size = 0x12000, scoped, tag = 'internal scratch']
  %s0 = inlined_call_operand.hbm [shape: f32[8,6], index: 0, kind: input, shape index: {}]
  %s1 = inlined_call_operand.hbm [shape: bf16[6,32], index: 1, kind: input, shape index: {}]
  %s2 = inlined_call_operand.hbm [shape: bf16[2,32,32], index: 2, kind: input, shape index: {}]
  %s3 = inlined_call_operand.vmem [shape: bf16[1,32], index: 3, kind: input, shape index: {}]
  %s4 = inlined_call_operand.vmem [shape: f32[8,1], index: 4, kind: output, shape index: {}]
  %s5 = sld [smem:[#allocation0]]
  $region38: #{tpu_custom_call.1} parent=0
    _
  %s7 = ssub.s32 1, %s5
  %s8 = scalar_select 0, %s7, %s5
  $region1: #{tpu_custom_call.1} parent=0
    #allocation2 [shape = 'u8[4096]{0}', space=vmem, size = 0x1000, scoped, tag = 'input window, operand 0, single buffered']
    #allocation3 [shape = 's32[1]{0}', space=sflag, size = 0x4, scoped, tag = 'scoped memory for tpu_custom_call.1']
    #allocation4 [shape = 'u8[2048]{0}', space=vmem, size = 0x800, scoped, tag = 'input window, operand 1, single buffered']
    #allocation5 [shape = 's32[1]{0}', space=sflag, size = 0x4, scoped, tag = 'scoped memory for tpu_custom_call.1']
    #allocation6 [shape = 'u8[16384]{0}', space=vmem, size = 0x4000, scoped, tag = 'input window, operand 2, single buffered']
    %9 = vsyncpa [#allocation3], 0
    %10 = vsyncpa [#allocation5], 0
    // Predicated region
    $region2: #{tpu_custom_call.1} parent=1 // pred_check
      _
    $region3: #{tpu_custom_call.1} parent=1 // pred_check_branch
      %12 = sbr.rel (0) target = $region5
    $region4: #{tpu_custom_call.1} parent=1 // pred_region
      %s14 = ssub.s32 128, 128
      %15 = vsyncadd [#allocation3], %s14
      %s17 = sshll.u32 [#allocation2], 4
      %s18 = int_to_ptr.vmem [resolvable:$true] %s17
      %20 = dma.hbm_to_vmem [thread:$0]  %s0, 128, %s18, [#allocation3]
    $region5: #{tpu_custom_call.1} parent=1 // pred_fallthru
      _
    // Predicated region
    $region6: #{tpu_custom_call.1} parent=1 // pred_check
      _
    $region7: #{tpu_custom_call.1} parent=1 // pred_check_branch
      %22 = sbr.rel (0) target = $region9
    $region8: #{tpu_custom_call.1} parent=1 // pred_region
      %s24 = ssub.s32 64, 64
      %25 = vsyncadd [#allocation5], %s24
      %s27 = sshll.u32 [#allocation4], 4
      %s28 = int_to_ptr.vmem [resolvable:$true] %s27
      %30 = dma.hbm_to_vmem [thread:$0]  %s1, 64, %s28, [#allocation5]
    $region9: #{tpu_custom_call.1} parent=1 // pred_fallthru
      _
    // Predicated region
    $region10: #{tpu_custom_call.1} parent=1 // pred_check
      _
    $region11: #{tpu_custom_call.1} parent=1 // pred_check_branch
      %32 = sbr.rel (0) target = $region13
    $region12: #{tpu_custom_call.1} parent=1 // pred_region
      %s34 = ssub.s32 512, 512
      %35 = vsyncadd [#allocation5], %s34
      %s36 = sshll.u32 [#allocation6], 4
      %s37 = int_to_ptr.vmem [resolvable:$true] %s36
      %42 = dma.hbm_to_vmem [thread:$0]  %s2, 512, %s37, [#allocation5], 64, 64, 4
    $region13: #{tpu_custom_call.1} parent=1 // pred_fallthru
      _
    // Predicated region
    $region14: #{tpu_custom_call.1} parent=1 // pred_check
      _
    $region15: #{tpu_custom_call.1} parent=1 // pred_check_branch
      %44 = sbr.rel (0) target = $region17
    $region16: #{tpu_custom_call.1} parent=1 // pred_region
      _
    $region17: #{tpu_custom_call.1} parent=1 // pred_fallthru
      _
    // Predicated region
    $region18: #{tpu_custom_call.1} parent=1 // pred_check
      _
    $region19: #{tpu_custom_call.1} parent=1 // pred_check_branch
      %46 = sbr.rel (0) target = $region21
    $region20: #{tpu_custom_call.1} parent=1 // pred_region
      %47 = dma.done [#allocation3], 128
    $region21: #{tpu_custom_call.1} parent=1 // pred_fallthru
      _
    // Predicated region
    $region22: #{tpu_custom_call.1} parent=1 // pred_check
      _
    $region23: #{tpu_custom_call.1} parent=1 // pred_check_branch
      %49 = sbr.rel (0) target = $region25
    $region24: #{tpu_custom_call.1} parent=1 // pred_region
      %50 = dma.done [#allocation5], 64
    $region25: #{tpu_custom_call.1} parent=1 // pred_fallthru
      _
    // Predicated region
    $region26: #{tpu_custom_call.1} parent=1 // pred_check
      _
    $region27: #{tpu_custom_call.1} parent=1 // pred_check_branch
      %52 = sbr.rel (0) target = $region29
    $region28: #{tpu_custom_call.1} parent=1 // pred_region
      %53 = dma.done [#allocation5], 512
    $region29: #{tpu_custom_call.1} parent=1 // pred_fallthru
      _
    %v55 = vld [vmem:[#allocation2] sm:$0xff]
    %v56 = vpack.c.bf16 %v55, %v55
    %v57 = vld [vmem:[#allocation4] sm:$0x7]
    %vm58 = vcmask 48128
    %v60 = vsel %vm58, %v56, 0
    %vm62 = vcmask 1042432
    %v64 = vsel %vm62, %v57, 0
    %66 = vmatprep.subr.bf16.mxu0 0
    %67 = vmatpush1.bf16.msra.mxu0 %v64
    %68 = vmatprep.subr.bf16.mxu0 0
    %69 = vmatpush1.bf16.msra.mxu0 0
    %70 = vmatprep.subr.bf16.mxu0 0
    %71 = vmatpush1.bf16.msra.mxu0 0
    %72 = vmatprep.subr.bf16.mxu0 0
    %73 = vmatpush1.bf16.msra.mxu0 0
    %74 = vmatprep.subr.bf16.mxu0 0
    %75 = vmatpush1.bf16.msra.mxu0 0
    %76 = vmatprep.subr.bf16.mxu0 0
    %77 = vmatpush1.bf16.msra.mxu0 0
    %78 = vmatprep.subr.bf16.mxu0 0
    %79 = vmatpush1.bf16.msra.mxu0 0
    %80 = vmatprep.subr.bf16.mxu0 0
    %81 = vmatpush1.bf16.msra.mxu0 0
    %82 = vmatprep.subr.bf16.mxu0 0
    %83 = vmatpush1.bf16.msra.mxu0 0
    %84 = vmatprep.subr.bf16.mxu0 0
    %85 = vmatpush1.bf16.msra.mxu0 0
    %86 = vmatprep.subr.bf16.mxu0 0
    %87 = vmatpush1.bf16.msra.mxu0 0
    %88 = vmatprep.subr.bf16.mxu0 0
    %89 = vmatpush1.bf16.msra.mxu0 0
    %90 = vmatprep.subr.bf16.mxu0 0
    %91 = vmatpush1.bf16.msra.mxu0 0
    %92 = vmatprep.subr.bf16.mxu0 0
    %93 = vmatpush1.bf16.msra.mxu0 0
    %94 = vmatprep.subr.bf16.mxu0 0
    %95 = vmatpush1.bf16.msra.mxu0 0
    %96 = vmatprep.subr.bf16.mxu0 0
    %97 = vmatpush1.bf16.msra.mxu0 0
    %98 = vmatprep.mubr.bf16.mxu0 0
    %99 = vmatmul.mubr.bf16.gmra.mrb[0].mxu0 %v60
    %v100 = vpop.f32.mrb[0].mxu0
    %v101 = vadd.f32 0.0, %v100
    %v102 = vpop.f32.mrb[0].mxu0
    %v103 = vpop.f32.mrb[0].mxu0
    %v104 = vpop.f32.mrb[0].mxu0
    %105 = vdwg.mxu0
    %v106 = vtanh.pop %v101
    %v107 = vld [vmem:[#allocation6] sm:$0xf]
    %v108 = vld [vmem:[#allocation6 + $0x4] sm:$0xf]
    %v109 = vld [vmem:[#allocation6 + $0x8] sm:$0xf]
    %v110 = vld [vmem:[#allocation6 + $0xc] sm:$0xf]
    %v111 = vpack.c.bf16 %v106, %v106
    %113 = vrot.lane.b32.xlu0 %v106, 112
    %v114 = vpop.permute.xlu0 %113
    %v116 = vmul.f32 %v106, %v114
    %v117 = vpack.c.bf16 %v116, %v116
    %v120 = vunpack.c.l.b16 %v109
    %v121 = vunpack.c.l.b16 %v110
    %v122 = vpack.c.b16 %v121, %v120
    %vm124 = vcmask 130048
    %v126 = vsel %vm124, %v117, 0
    %128 = vmatprep.subr.bf16.mxu0 0
    %129 = vmatpush1.bf16.msra.mxu0 %v122
    %130 = vmatprep.subr.bf16.mxu0 0
    %131 = vmatpush1.bf16.msra.mxu0 0
    %132 = vmatprep.subr.bf16.mxu0 0
    %133 = vmatpush1.bf16.msra.mxu0 0
    %134 = vmatprep.subr.bf16.mxu0 0
    %135 = vmatpush1.bf16.msra.mxu0 0
    %136 = vmatprep.subr.bf16.mxu0 0
    %137 = vmatpush1.bf16.msra.mxu0 0
    %138 = vmatprep.subr.bf16.mxu0 0
    %139 = vmatpush1.bf16.msra.mxu0 0
    %140 = vmatprep.subr.bf16.mxu0 0
    %141 = vmatpush1.bf16.msra.mxu0 0
    %142 = vmatprep.subr.bf16.mxu0 0
    %143 = vmatpush1.bf16.msra.mxu0 0
    %144 = vmatprep.subr.bf16.mxu0 0
    %145 = vmatpush1.bf16.msra.mxu0 0
    %146 = vmatprep.subr.bf16.mxu0 0
    %147 = vmatpush1.bf16.msra.mxu0 0
    %148 = vmatprep.subr.bf16.mxu0 0
    %149 = vmatpush1.bf16.msra.mxu0 0
    %150 = vmatprep.subr.bf16.mxu0 0
    %151 = vmatpush1.bf16.msra.mxu0 0
    %152 = vmatprep.subr.bf16.mxu0 0
    %153 = vmatpush1.bf16.msra.mxu0 0
    %154 = vmatprep.subr.bf16.mxu0 0
    %155 = vmatpush1.bf16.msra.mxu0 0
    %156 = vmatprep.subr.bf16.mxu0 0
    %157 = vmatpush1.bf16.msra.mxu0 0
    %158 = vmatprep.subr.bf16.mxu0 0
    %159 = vmatpush1.bf16.msra.mxu0 0
    %160 = vmatprep.mubr.bf16.mxu0 0
    %161 = vmatmul.mubr.bf16.gmra.mrb[0].mxu0 %v126
    %v162 = vpop.f32.mrb[0].mxu0
    %v163 = vadd.f32 0.0, %v162
    %v164 = vpop.f32.mrb[0].mxu0
    %v165 = vpop.f32.mrb[0].mxu0
    %v166 = vpop.f32.mrb[0].mxu0
    %167 = vdwg.mxu0
    %169 = vrot.lane.b32.xlu0 %v111, 112
    %v170 = vpop.permute.xlu0 %169
    %v173 = vunpack.c.l.b16 %v107
    %v174 = vunpack.c.l.b16 %v108
    %v175 = vpack.c.b16 %v174, %v173
    %v178 = vsel %vm124, %v170, 0
    %180 = vmatprep.subr.bf16.mxu0 0
    %181 = vmatpush1.bf16.msra.mxu0 %v175
    %182 = vmatprep.subr.bf16.mxu0 0
    %183 = vmatpush1.bf16.msra.mxu0 0
    %184 = vmatprep.subr.bf16.mxu0 0
    %185 = vmatpush1.bf16.msra.mxu0 0
    %186 = vmatprep.subr.bf16.mxu0 0
    %187 = vmatpush1.bf16.msra.mxu0 0
    %188 = vmatprep.subr.bf16.mxu0 0
    %189 = vmatpush1.bf16.msra.mxu0 0
    %190 = vmatprep.subr.bf16.mxu0 0
    %191 = vmatpush1.bf16.msra.mxu0 0
    %192 = vmatprep.subr.bf16.mxu0 0
    %193 = vmatpush1.bf16.msra.mxu0 0
    %194 = vmatprep.subr.bf16.mxu0 0
    %195 = vmatpush1.bf16.msra.mxu0 0
    %196 = vmatprep.subr.bf16.mxu0 0
    %197 = vmatpush1.bf16.msra.mxu0 0
    %198 = vmatprep.subr.bf16.mxu0 0
    %199 = vmatpush1.bf16.msra.mxu0 0
    %200 = vmatprep.subr.bf16.mxu0 0
    %201 = vmatpush1.bf16.msra.mxu0 0
    %202 = vmatprep.subr.bf16.mxu0 0
    %203 = vmatpush1.bf16.msra.mxu0 0
    %204 = vmatprep.subr.bf16.mxu0 0
    %205 = vmatpush1.bf16.msra.mxu0 0
    %206 = vmatprep.subr.bf16.mxu0 0
    %207 = vmatpush1.bf16.msra.mxu0 0
    %208 = vmatprep.subr.bf16.mxu0 0
    %209 = vmatpush1.bf16.msra.mxu0 0
    %210 = vmatprep.subr.bf16.mxu0 0
    %211 = vmatpush1.bf16.msra.mxu0 0
    %212 = vmatprep.mubr.bf16.mxu0 0
    %213 = vmatmul.mubr.bf16.gmra.mrb[0].mxu0 %v178
    %v214 = vpop.f32.mrb[0].mxu0
    %v215 = vadd.f32 %v163, %v214
    %v216 = vpop.f32.mrb[0].mxu0
    %v217 = vpop.f32.mrb[0].mxu0
    %v218 = vpop.f32.mrb[0].mxu0
    %219 = vdwg.mxu0
    %v220 = vtanh.pop %v215
    %v221 = vpack.c.bf16 %v220, %v220
    %s222 = scalar_lea.vmem [#allocation6], 16
    %v223 = vld [vmem:[%s222] sm:$0xf]
    %v224 = vld [vmem:[%s222 + $0x4] sm:$0xf]
    %v225 = vld [vmem:[%s222 + $0x8] sm:$0xf]
    %v226 = vld [vmem:[%s222 + $0xc] sm:$0xf]
    %v231 = vunpack.c.l.b16 %v223
    %v232 = vunpack.c.l.b16 %v224
    %v233 = vunpack.c.l.b16 %v225
    %v234 = vunpack.c.l.b16 %v226
    %v235 = vpack.c.b16 %v232, %v231
    %v236 = vpack.c.b16 %v234, %v233
    %vm239 = vcmask 261120
    %v241 = vsel %vm239, %v221, 0
    %243 = vmatprep.subr.bf16.mxu0 0
    %244 = vmatpush1.bf16.msra.mxu0 %v235
    %245 = vmatprep.subr.bf16.mxu0 0
    %246 = vmatpush1.bf16.msra.mxu0 %v236
    %247 = vmatprep.subr.bf16.mxu0 0
    %248 = vmatpush1.bf16.msra.mxu0 0
    %249 = vmatprep.subr.bf16.mxu0 0
    %250 = vmatpush1.bf16.msra.mxu0 0
    %251 = vmatprep.subr.bf16.mxu0 0
    %252 = vmatpush1.bf16.msra.mxu0 0
    %253 = vmatprep.subr.bf16.mxu0 0
    %254 = vmatpush1.bf16.msra.mxu0 0
    %255 = vmatprep.subr.bf16.mxu0 0
    %256 = vmatpush1.bf16.msra.mxu0 0
    %257 = vmatprep.subr.bf16.mxu0 0
    %258 = vmatpush1.bf16.msra.mxu0 0
    %259 = vmatprep.subr.bf16.mxu0 0
    %260 = vmatpush1.bf16.msra.mxu0 0
    %261 = vmatprep.subr.bf16.mxu0 0
    %262 = vmatpush1.bf16.msra.mxu0 0
    %263 = vmatprep.subr.bf16.mxu0 0
    %264 = vmatpush1.bf16.msra.mxu0 0
    %265 = vmatprep.subr.bf16.mxu0 0
    %266 = vmatpush1.bf16.msra.mxu0 0
    %267 = vmatprep.subr.bf16.mxu0 0
    %268 = vmatpush1.bf16.msra.mxu0 0
    %269 = vmatprep.subr.bf16.mxu0 0
    %270 = vmatpush1.bf16.msra.mxu0 0
    %271 = vmatprep.subr.bf16.mxu0 0
    %272 = vmatpush1.bf16.msra.mxu0 0
    %273 = vmatprep.subr.bf16.mxu0 0
    %274 = vmatpush1.bf16.msra.mxu0 0
    %275 = vmatprep.mubr.bf16.mxu0 0
    %276 = vmatmul.mubr.bf16.gmra.mrb[0].mxu0 %v241
    %v277 = vpop.f32.mrb[0].mxu0
    %v278 = vadd.f32 0.0, %v277
    %v279 = vpop.f32.mrb[0].mxu0
    %v280 = vpop.f32.mrb[0].mxu0
    %v281 = vpop.f32.mrb[0].mxu0
    %282 = vdwg.mxu0
    %v283 = vtanh.pop %v278
    %v284 = vld [vmem:[%s3] sm:$0x1]
    %v285 = vunpack.c.l.bf16 %v284
    %v286 = vlaneseq
    %v287 = vshrl.u32 %v286, 7
    %v288 = vsub.s32 0, %v287
    %v289 = vrot.slane %v285, %v288
    %v290 = vmul.f32 %v283, %v289
    %v291 = vsel %vm239, %v290, 0.0
    %292 = vadd.xlane.f32.xlu0 %v291
    %v293 = vpop.xlane.xlu0 %292
    %v294 = vtanh.pop %v293
    %vm295 = vcmask 7168
    %296 = vst.msk [vmem:[%s4] sm:$0xff] %vm295, %v294
    // Predicated region
    $region30: #{tpu_custom_call.1} parent=1 // pred_check
      _
    $region31: #{tpu_custom_call.1} parent=1 // pred_check_branch
      %298 = sbr.rel (0) target = $region33
    $region32: #{tpu_custom_call.1} parent=1 // pred_region
      _
    $region33: #{tpu_custom_call.1} parent=1 // pred_fallthru
      _
    // Predicated region
    $region34: #{tpu_custom_call.1} parent=1 // pred_check
      _
    $region35: #{tpu_custom_call.1} parent=1 // pred_check_branch
      %300 = sbr.rel (0) target = $region37
    $region36: #{tpu_custom_call.1} parent=1 // pred_region
      _
    $region37: #{tpu_custom_call.1} parent=1 // pred_fallthru
      _
    %301 = vsyncpa [#allocation3], 1
    %302 = vsyncpa [#allocation5], 1

</llo_original>
